<compile_context>
chip_gen: v7x
topology: tpu7x:2x2x1
jax: 0.10.0
libtpu: 0.0.40
codegen_flags: <defaults>
</compile_context>

<pallas_src>
import jax
import jax.numpy as jnp
from jax.experimental import pallas as pl
from jax.experimental.pallas import tpu as pltpu


# ---------------- Pallas kernel ----------------

def make_fused_kernel(H, W):
    """1x1-conv(+pad=1) + bias + residual add for one image per grid step."""
    Ho, Wo = H + 2, W + 2

    def kernel(x_ref, w_ref, b_ref, other_ref, o_ref):
        # x_ref:     (1, Cin,  H*W)    unpadded input pixels (lane-dense)
        # w_ref:     (Cout, Cin)       1x1 conv weight
        # b_ref:     (Cout, 1)         conv bias
        # other_ref: (1, Cout, Ho*Wo)  residual (padded spatial, flattened)
        # o_ref:     (1, Cout, Ho*Wo)  output  (padded spatial, flattened)
        conv = jnp.dot(
            w_ref[...],
            x_ref[0],
            preferred_element_type=jnp.float32,
            precision=jax.lax.Precision.HIGHEST,
        )  # (Cout, H*W)

        # Zero-padded border of a 1x1 conv is exactly `bias`; start the whole
        # padded frame at bias + other (border rows/cols are final after this).
        o_ref[0] = other_ref[0] + b_ref[...]

        # Scatter the conv result into the interior of the padded frame,
        # one image row at a time (static, unrolled slice stores).
        for h in range(H):
            src = h * W
            dst = (h + 1) * Wo + 1
            o_ref[0, :, dst:dst + W] = (
                o_ref[0, :, dst:dst + W] + conv[:, src:src + W]
            )

    return kernel


def fused_forward(x_flat, w2d, bias2d, other_flat, H, W):
    """x_flat: (N, Cin, H*W), w2d: (Cout, Cin), bias2d: (Cout, 1),
    other_flat: (N, Cout, (H+2)*(W+2)) -> (N, Cout, (H+2)*(W+2))."""
    N, Cin, HW = x_flat.shape
    Cout = w2d.shape[0]
    P = (H + 2) * (W + 2)

    flops = 2 * N * Cout * Cin * HW
    bytes_accessed = 4 * (x_flat.size + w2d.size + bias2d.size
                          + other_flat.size + N * Cout * P)

    return pl.pallas_call(
        make_fused_kernel(H, W),
        out_shape=jax.ShapeDtypeStruct((N, Cout, P), jnp.float32),
        grid=(N,),  # one image per step; each block is fully VMEM-resident
        in_specs=[
            pl.BlockSpec((1, Cin, HW), lambda n: (n, 0, 0)),
            pl.BlockSpec((Cout, Cin), lambda n: (0, 0)),
            pl.BlockSpec((Cout, 1), lambda n: (0, 0)),
            pl.BlockSpec((1, Cout, P), lambda n: (n, 0, 0)),
        ],
        out_specs=pl.BlockSpec((1, Cout, P), lambda n: (n, 0, 0)),
        compiler_params=pltpu.CompilerParams(
            dimension_semantics=("parallel",),
        ),
        cost_estimate=pl.CostEstimate(
            flops=flops, transcendentals=0, bytes_accessed=bytes_accessed
        ),
    )(x_flat, w2d, bias2d, other_flat)


# ---------------- Wrapper (forward pass) ----------------

@jax.jit
def model_forward(x1, weight, bias, other):
    """Reproduces Model.forward.

    x1:     (N, 12, H, W)      NCHW float32
    weight: (8, 12, 1, 1)      conv weight
    bias:   (8,)               conv bias
    other:  (N, 8, H+2, W+2)   tensor added to the conv output
    returns (N, 8, H+2, W+2)
    """
    N, Cin, H, W = x1.shape
    Cout = weight.shape[0]
    Ho, Wo = H + 2, W + 2  # padding=1 with a 1x1 kernel

    # Contiguous (metadata-only) reshapes: NCHW already has spatial last.
    x_flat = x1.reshape(N, Cin, H * W)
    other_flat = other.reshape(N, Cout, Ho * Wo)
    w2d = weight.reshape(Cout, Cin)
    bias2d = bias.reshape(Cout, 1)

    out_flat = fused_forward(x_flat, w2d, bias2d, other_flat, H, W)
    return out_flat.reshape(N, Cout, Ho, Wo)


if __name__ == "__main__":
    key = jax.random.PRNGKey(0)
    k_x, k_w, k_b, k_o = jax.random.split(key, 4)

    # Small shapes consistent with the module (Cin=12, Cout=8 fixed by conv).
    N, Cin, H, W = 2, 12, 16, 16
    Cout = 8

    x1 = jax.random.normal(k_x, (N, Cin, H, W), dtype=jnp.float32)
    # Synthetic conv parameters (same shapes as nn.Conv2d(12, 8, 1)).
    weight = jax.random.normal(k_w, (Cout, Cin, 1, 1), dtype=jnp.float32) * 0.1
    bias = jax.random.normal(k_b, (Cout,), dtype=jnp.float32) * 0.1
    # TODO(synk): torch draws `other = torch.randn(v1.shape)` inside forward
    # when not provided; here it is a deterministic explicit input instead.
    other = jax.random.normal(k_o, (N, Cout, H + 2, W + 2), dtype=jnp.float32)

    out = model_forward(x1, weight, bias, other)
    jax.block_until_ready(out)

    # Reference check with plain JAX (same semantics as torch Conv2d + add).
    ref_conv = jax.lax.conv_general_dilated(
        x1, weight, window_strides=(1, 1), padding=((1, 1), (1, 1)),
        dimension_numbers=("NCHW", "OIHW", "NCHW"),
        precision=jax.lax.Precision.HIGHEST,
    ) + bias.reshape(1, Cout, 1, 1)
    ref = ref_conv + other

    assert out.shape == (N, Cout, H + 2, W + 2)
    assert jnp.allclose(out, ref, atol=1e-4, rtol=1e-4)

    print("KERNEL_OK")
</pallas_src>

<mosaic_0001>
module attributes {stable_mosaic.version = 11 : i64} {
  func.func @kernel(%arg0: i32, %arg1: memref<1x12x256xf32, #tpu.memory_space<vmem>>, %arg2: memref<8x12xf32, #tpu.memory_space<vmem>>, %arg3: memref<8x1xf32, #tpu.memory_space<vmem>>, %arg4: memref<1x8x324xf32, #tpu.memory_space<vmem>>, %arg5: memref<1x8x324xf32, #tpu.memory_space<vmem>>) attributes {dimension_semantics = [#tpu.dimension_semantics<parallel>], iteration_bounds = array<i64: 2>, scalar_prefetch = 0 : i64, scratch_operands = 0 : i64, tpu.core_type = #tpu.core_type<tc>, window_params = [{transform_indices = @transform_0, window_bounds = array<i64: 1, 12, 256>}, {pipeline_mode = #tpu.pipeline_mode<synchronous>, transform_indices = @transform_1, window_bounds = array<i64: 8, 12>}, {pipeline_mode = #tpu.pipeline_mode<synchronous>, transform_indices = @transform_2, window_bounds = array<i64: 8, 1>}, {transform_indices = @transform_3, window_bounds = array<i64: 1, 8, 324>}, {transform_indices = @transform_4, window_bounds = array<i64: 1, 8, 324>}]} {
    %c0 = arith.constant 0 : index
    %c0_0 = arith.constant 0 : index
    %0 = vector.load %arg2[%c0, %c0_0] : memref<8x12xf32, #tpu.memory_space<vmem>>, vector<8x12xf32>
    %c0_1 = arith.constant 0 : index
    %c0_2 = arith.constant 0 : index
    %c0_3 = arith.constant 0 : index
    %1 = vector.load %arg1[%c0_1, %c0_2, %c0_3] : memref<1x12x256xf32, #tpu.memory_space<vmem>>, vector<1x12x256xf32>
    %2 = vector.shape_cast %1 : vector<1x12x256xf32> to vector<12x256xf32>
    %cst = arith.constant dense<0.000000e+00> : vector<8x256xf32>
    %3 = tpu.matmul %0, %2, %cst {dimension_numbers = #tpu.dot_dimension_numbers<[1], [0], [0], [1], [0, 0, 1, 1], [], []>, precision = #tpu.contract_precision<fp32>} : vector<8x12xf32>, vector<12x256xf32>, vector<8x256xf32> -> vector<8x256xf32>
    %c0_4 = arith.constant 0 : index
    %c0_5 = arith.constant 0 : index
    %c0_6 = arith.constant 0 : index
    %4 = vector.load %arg4[%c0_4, %c0_5, %c0_6] : memref<1x8x324xf32, #tpu.memory_space<vmem>>, vector<1x8x324xf32>
    %5 = vector.shape_cast %4 : vector<1x8x324xf32> to vector<8x324xf32>
    %c0_7 = arith.constant 0 : index
    %c0_8 = arith.constant 0 : index
    %6 = vector.load %arg3[%c0_7, %c0_8] : memref<8x1xf32, #tpu.memory_space<vmem>>, vector<8x1xf32>
    %7 = vector.broadcast %6 : vector<8x1xf32> to vector<8x324xf32>
    %8 = arith.addf %5, %7 : vector<8x324xf32>
    %c0_9 = arith.constant 0 : index
    %c0_10 = arith.constant 0 : index
    %c0_11 = arith.constant 0 : index
    %9 = vector.load %arg5[%c0_9, %c0_10, %c0_11] : memref<1x8x324xf32, #tpu.memory_space<vmem>>, vector<1x8x324xf32>
    %10 = vector.shape_cast %9 : vector<1x8x324xf32> to vector<8x324xf32>
    %11 = vector.shape_cast %8 : vector<8x324xf32> to vector<1x8x324xf32>
    tpu.vector_store %arg5[%c0_9, %c0_10, %c0_11], %11 {strides = array<i32>} : memref<1x8x324xf32, #tpu.memory_space<vmem>>, vector<1x8x324xf32>,
    %c0_12 = arith.constant 0 : index
    %c0_13 = arith.constant 0 : index
    %c19 = arith.constant 19 : index
    %12 = vector.load %arg5[%c0_12, %c0_13, %c19] : memref<1x8x324xf32, #tpu.memory_space<vmem>>, vector<1x8x16xf32>
    %13 = vector.shape_cast %12 : vector<1x8x16xf32> to vector<8x16xf32>
    %14 = vector.extract_strided_slice %3 {offsets = [0, 0], sizes = [8, 16], strides = [1, 1]} : vector<8x256xf32> to vector<8x16xf32>
    %15 = arith.addf %13, %14 : vector<8x16xf32>
    %c0_14 = arith.constant 0 : index
    %c0_15 = arith.constant 0 : index
    %c19_16 = arith.constant 19 : index
    %16 = vector.load %arg5[%c0_14, %c0_15, %c19_16] : memref<1x8x324xf32, #tpu.memory_space<vmem>>, vector<1x8x16xf32>
    %17 = vector.shape_cast %16 : vector<1x8x16xf32> to vector<8x16xf32>
    %18 = vector.shape_cast %15 : vector<8x16xf32> to vector<1x8x16xf32>
    tpu.vector_store %arg5[%c0_14, %c0_15, %c19_16], %18 {strides = array<i32>} : memref<1x8x324xf32, #tpu.memory_space<vmem>>, vector<1x8x16xf32>,
    %c0_17 = arith.constant 0 : index
    %c0_18 = arith.constant 0 : index
    %c37 = arith.constant 37 : index
    %19 = vector.load %arg5[%c0_17, %c0_18, %c37] : memref<1x8x324xf32, #tpu.memory_space<vmem>>, vector<1x8x16xf32>
    %20 = vector.shape_cast %19 : vector<1x8x16xf32> to vector<8x16xf32>
    %21 = vector.extract_strided_slice %3 {offsets = [0, 16], sizes = [8, 16], strides = [1, 1]} : vector<8x256xf32> to vector<8x16xf32>
    %22 = arith.addf %20, %21 : vector<8x16xf32>
    %c0_19 = arith.constant 0 : index
    %c0_20 = arith.constant 0 : index
    %c37_21 = arith.constant 37 : index
    %23 = vector.load %arg5[%c0_19, %c0_20, %c37_21] : memref<1x8x324xf32, #tpu.memory_space<vmem>>, vector<1x8x16xf32>
    %24 = vector.shape_cast %23 : vector<1x8x16xf32> to vector<8x16xf32>
    %25 = vector.shape_cast %22 : vector<8x16xf32> to vector<1x8x16xf32>
    tpu.vector_store %arg5[%c0_19, %c0_20, %c37_21], %25 {strides = array<i32>} : memref<1x8x324xf32, #tpu.memory_space<vmem>>, vector<1x8x16xf32>,
    %c0_22 = arith.constant 0 : index
    %c0_23 = arith.constant 0 : index
    %c55 = arith.constant 55 : index
    %26 = vector.load %arg5[%c0_22, %c0_23, %c55] : memref<1x8x324xf32, #tpu.memory_space<vmem>>, vector<1x8x16xf32>
    %27 = vector.shape_cast %26 : vector<1x8x16xf32> to vector<8x16xf32>
    %28 = vector.extract_strided_slice %3 {offsets = [0, 32], sizes = [8, 16], strides = [1, 1]} : vector<8x256xf32> to vector<8x16xf32>
    %29 = arith.addf %27, %28 : vector<8x16xf32>
    %c0_24 = arith.constant 0 : index
    %c0_25 = arith.constant 0 : index
    %c55_26 = arith.constant 55 : index
    %30 = vector.load %arg5[%c0_24, %c0_25, %c55_26] : memref<1x8x324xf32, #tpu.memory_space<vmem>>, vector<1x8x16xf32>
    %31 = vector.shape_cast %30 : vector<1x8x16xf32> to vector<8x16xf32>
    %32 = vector.shape_cast %29 : vector<8x16xf32> to vector<1x8x16xf32>
    tpu.vector_store %arg5[%c0_24, %c0_25, %c55_26], %32 {strides = array<i32>} : memref<1x8x324xf32, #tpu.memory_space<vmem>>, vector<1x8x16xf32>,
    %c0_27 = arith.constant 0 : index
    %c0_28 = arith.constant 0 : index
    %c73 = arith.constant 73 : index
    %33 = vector.load %arg5[%c0_27, %c0_28, %c73] : memref<1x8x324xf32, #tpu.memory_space<vmem>>, vector<1x8x16xf32>
    %34 = vector.shape_cast %33 : vector<1x8x16xf32> to vector<8x16xf32>
    %35 = vector.extract_strided_slice %3 {offsets = [0, 48], sizes = [8, 16], strides = [1, 1]} : vector<8x256xf32> to vector<8x16xf32>
    %36 = arith.addf %34, %35 : vector<8x16xf32>
    %c0_29 = arith.constant 0 : index
    %c0_30 = arith.constant 0 : index
    %c73_31 = arith.constant 73 : index
    %37 = vector.load %arg5[%c0_29, %c0_30, %c73_31] : memref<1x8x324xf32, #tpu.memory_space<vmem>>, vector<1x8x16xf32>
    %38 = vector.shape_cast %37 : vector<1x8x16xf32> to vector<8x16xf32>
    %39 = vector.shape_cast %36 : vector<8x16xf32> to vector<1x8x16xf32>
    tpu.vector_store %arg5[%c0_29, %c0_30, %c73_31], %39 {strides = array<i32>} : memref<1x8x324xf32, #tpu.memory_space<vmem>>, vector<1x8x16xf32>,
    %c0_32 = arith.constant 0 : index
    %c0_33 = arith.constant 0 : index
    %c91 = arith.constant 91 : index
    %40 = vector.load %arg5[%c0_32, %c0_33, %c91] : memref<1x8x324xf32, #tpu.memory_space<vmem>>, vector<1x8x16xf32>
    %41 = vector.shape_cast %40 : vector<1x8x16xf32> to vector<8x16xf32>
    %42 = vector.extract_strided_slice %3 {offsets = [0, 64], sizes = [8, 16], strides = [1, 1]} : vector<8x256xf32> to vector<8x16xf32>
    %43 = arith.addf %41, %42 : vector<8x16xf32>
    %c0_34 = arith.constant 0 : index
    %c0_35 = arith.constant 0 : index
    %c91_36 = arith.constant 91 : index
    %44 = vector.load %arg5[%c0_34, %c0_35, %c91_36] : memref<1x8x324xf32, #tpu.memory_space<vmem>>, vector<1x8x16xf32>
    %45 = vector.shape_cast %44 : vector<1x8x16xf32> to vector<8x16xf32>
    %46 = vector.shape_cast %43 : vector<8x16xf32> to vector<1x8x16xf32>
    tpu.vector_store %arg5[%c0_34, %c0_35, %c91_36], %46 {strides = array<i32>} : memref<1x8x324xf32, #tpu.memory_space<vmem>>, vector<1x8x16xf32>,
    %c0_37 = arith.constant 0 : index
    %c0_38 = arith.constant 0 : index
    %c109 = arith.constant 109 : index
    %47 = vector.load %arg5[%c0_37, %c0_38, %c109] : memref<1x8x324xf32, #tpu.memory_space<vmem>>, vector<1x8x16xf32>
    %48 = vector.shape_cast %47 : vector<1x8x16xf32> to vector<8x16xf32>
    %49 = vector.extract_strided_slice %3 {offsets = [0, 80], sizes = [8, 16], strides = [1, 1]} : vector<8x256xf32> to vector<8x16xf32>
    %50 = arith.addf %48, %49 : vector<8x16xf32>
    %c0_39 = arith.constant 0 : index
    %c0_40 = arith.constant 0 : index
    %c109_41 = arith.constant 109 : index
    %51 = vector.load %arg5[%c0_39, %c0_40, %c109_41] : memref<1x8x324xf32, #tpu.memory_space<vmem>>, vector<1x8x16xf32>
    %52 = vector.shape_cast %51 : vector<1x8x16xf32> to vector<8x16xf32>
    %53 = vector.shape_cast %50 : vector<8x16xf32> to vector<1x8x16xf32>
    tpu.vector_store %arg5[%c0_39, %c0_40, %c109_41], %53 {strides = array<i32>} : memref<1x8x324xf32, #tpu.memory_space<vmem>>, vector<1x8x16xf32>,
    %c0_42 = arith.constant 0 : index
    %c0_43 = arith.constant 0 : index
    %c127 = arith.constant 127 : index
    %54 = vector.load %arg5[%c0_42, %c0_43, %c127] : memref<1x8x324xf32, #tpu.memory_space<vmem>>, vector<1x8x16xf32>
    %55 = vector.shape_cast %54 : vector<1x8x16xf32> to vector<8x16xf32>
    %56 = vector.extract_strided_slice %3 {offsets = [0, 96], sizes = [8, 16], strides = [1, 1]} : vector<8x256xf32> to vector<8x16xf32>
    %57 = arith.addf %55, %56 : vector<8x16xf32>
    %c0_44 = arith.constant 0 : index
    %c0_45 = arith.constant 0 : index
    %c127_46 = arith.constant 127 : index
    %58 = vector.load %arg5[%c0_44, %c0_45, %c127_46] : memref<1x8x324xf32, #tpu.memory_space<vmem>>, vector<1x8x16xf32>
    %59 = vector.shape_cast %58 : vector<1x8x16xf32> to vector<8x16xf32>
    %60 = vector.shape_cast %57 : vector<8x16xf32> to vector<1x8x16xf32>
    tpu.vector_store %arg5[%c0_44, %c0_45, %c127_46], %60 {strides = array<i32>} : memref<1x8x324xf32, #tpu.memory_space<vmem>>, vector<1x8x16xf32>,
    %c0_47 = arith.constant 0 : index
    %c0_48 = arith.constant 0 : index
    %c145 = arith.constant 145 : index
    %61 = vector.load %arg5[%c0_47, %c0_48, %c145] : memref<1x8x324xf32, #tpu.memory_space<vmem>>, vector<1x8x16xf32>
    %62 = vector.shape_cast %61 : vector<1x8x16xf32> to vector<8x16xf32>
    %63 = vector.extract_strided_slice %3 {offsets = [0, 112], sizes = [8, 16], strides = [1, 1]} : vector<8x256xf32> to vector<8x16xf32>
    %64 = arith.addf %62, %63 : vector<8x16xf32>
    %c0_49 = arith.constant 0 : index
    %c0_50 = arith.constant 0 : index
    %c145_51 = arith.constant 145 : index
    %65 = vector.load %arg5[%c0_49, %c0_50, %c145_51] : memref<1x8x324xf32, #tpu.memory_space<vmem>>, vector<1x8x16xf32>
    %66 = vector.shape_cast %65 : vector<1x8x16xf32> to vector<8x16xf32>
    %67 = vector.shape_cast %64 : vector<8x16xf32> to vector<1x8x16xf32>
    tpu.vector_store %arg5[%c0_49, %c0_50, %c145_51], %67 {strides = array<i32>} : memref<1x8x324xf32, #tpu.memory_space<vmem>>, vector<1x8x16xf32>,
    %c0_52 = arith.constant 0 : index
    %c0_53 = arith.constant 0 : index
    %c163 = arith.constant 163 : index
    %68 = vector.load %arg5[%c0_52, %c0_53, %c163] : memref<1x8x324xf32, #tpu.memory_space<vmem>>, vector<1x8x16xf32>
    %69 = vector.shape_cast %68 : vector<1x8x16xf32> to vector<8x16xf32>
    %70 = vector.extract_strided_slice %3 {offsets = [0, 128], sizes = [8, 16], strides = [1, 1]} : vector<8x256xf32> to vector<8x16xf32>
    %71 = arith.addf %69, %70 : vector<8x16xf32>
    %c0_54 = arith.constant 0 : index
    %c0_55 = arith.constant 0 : index
    %c163_56 = arith.constant 163 : index
    %72 = vector.load %arg5[%c0_54, %c0_55, %c163_56] : memref<1x8x324xf32, #tpu.memory_space<vmem>>, vector<1x8x16xf32>
    %73 = vector.shape_cast %72 : vector<1x8x16xf32> to vector<8x16xf32>
    %74 = vector.shape_cast %71 : vector<8x16xf32> to vector<1x8x16xf32>
    tpu.vector_store %arg5[%c0_54, %c0_55, %c163_56], %74 {strides = array<i32>} : memref<1x8x324xf32, #tpu.memory_space<vmem>>, vector<1x8x16xf32>,
    %c0_57 = arith.constant 0 : index
    %c0_58 = arith.constant 0 : index
    %c181 = arith.constant 181 : index
    %75 = vector.load %arg5[%c0_57, %c0_58, %c181] : memref<1x8x324xf32, #tpu.memory_space<vmem>>, vector<1x8x16xf32>
    %76 = vector.shape_cast %75 : vector<1x8x16xf32> to vector<8x16xf32>
    %77 = vector.extract_strided_slice %3 {offsets = [0, 144], sizes = [8, 16], strides = [1, 1]} : vector<8x256xf32> to vector<8x16xf32>
    %78 = arith.addf %76, %77 : vector<8x16xf32>
    %c0_59 = arith.constant 0 : index
    %c0_60 = arith.constant 0 : index
    %c181_61 = arith.constant 181 : index
    %79 = vector.load %arg5[%c0_59, %c0_60, %c181_61] : memref<1x8x324xf32, #tpu.memory_space<vmem>>, vector<1x8x16xf32>
    %80 = vector.shape_cast %79 : vector<1x8x16xf32> to vector<8x16xf32>
    %81 = vector.shape_cast %78 : vector<8x16xf32> to vector<1x8x16xf32>
    tpu.vector_store %arg5[%c0_59, %c0_60, %c181_61], %81 {strides = array<i32>} : memref<1x8x324xf32, #tpu.memory_space<vmem>>, vector<1x8x16xf32>,
    %c0_62 = arith.constant 0 : index
    %c0_63 = arith.constant 0 : index
    %c199 = arith.constant 199 : index
    %82 = vector.load %arg5[%c0_62, %c0_63, %c199] : memref<1x8x324xf32, #tpu.memory_space<vmem>>, vector<1x8x16xf32>
    %83 = vector.shape_cast %82 : vector<1x8x16xf32> to vector<8x16xf32>
    %84 = vector.extract_strided_slice %3 {offsets = [0, 160], sizes = [8, 16], strides = [1, 1]} : vector<8x256xf32> to vector<8x16xf32>
    %85 = arith.addf %83, %84 : vector<8x16xf32>
    %c0_64 = arith.constant 0 : index
    %c0_65 = arith.constant 0 : index
    %c199_66 = arith.constant 199 : index
    %86 = vector.load %arg5[%c0_64, %c0_65, %c199_66] : memref<1x8x324xf32, #tpu.memory_space<vmem>>, vector<1x8x16xf32>
    %87 = vector.shape_cast %86 : vector<1x8x16xf32> to vector<8x16xf32>
    %88 = vector.shape_cast %85 : vector<8x16xf32> to vector<1x8x16xf32>
    tpu.vector_store %arg5[%c0_64, %c0_65, %c199_66], %88 {strides = array<i32>} : memref<1x8x324xf32, #tpu.memory_space<vmem>>, vector<1x8x16xf32>,
    %c0_67 = arith.constant 0 : index
    %c0_68 = arith.constant 0 : index
    %c217 = arith.constant 217 : index
    %89 = vector.load %arg5[%c0_67, %c0_68, %c217] : memref<1x8x324xf32, #tpu.memory_space<vmem>>, vector<1x8x16xf32>
    %90 = vector.shape_cast %89 : vector<1x8x16xf32> to vector<8x16xf32>
    %91 = vector.extract_strided_slice %3 {offsets = [0, 176], sizes = [8, 16], strides = [1, 1]} : vector<8x256xf32> to vector<8x16xf32>
    %92 = arith.addf %90, %91 : vector<8x16xf32>
    %c0_69 = arith.constant 0 : index
    %c0_70 = arith.constant 0 : index
    %c217_71 = arith.constant 217 : index
    %93 = vector.load %arg5[%c0_69, %c0_70, %c217_71] : memref<1x8x324xf32, #tpu.memory_space<vmem>>, vector<1x8x16xf32>
    %94 = vector.shape_cast %93 : vector<1x8x16xf32> to vector<8x16xf32>
    %95 = vector.shape_cast %92 : vector<8x16xf32> to vector<1x8x16xf32>
    tpu.vector_store %arg5[%c0_69, %c0_70, %c217_71], %95 {strides = array<i32>} : memref<1x8x324xf32, #tpu.memory_space<vmem>>, vector<1x8x16xf32>,
    %c0_72 = arith.constant 0 : index
    %c0_73 = arith.constant 0 : index
    %c235 = arith.constant 235 : index
    %96 = vector.load %arg5[%c0_72, %c0_73, %c235] : memref<1x8x324xf32, #tpu.memory_space<vmem>>, vector<1x8x16xf32>
    %97 = vector.shape_cast %96 : vector<1x8x16xf32> to vector<8x16xf32>
    %98 = vector.extract_strided_slice %3 {offsets = [0, 192], sizes = [8, 16], strides = [1, 1]} : vector<8x256xf32> to vector<8x16xf32>
    %99 = arith.addf %97, %98 : vector<8x16xf32>
    %c0_74 = arith.constant 0 : index
    %c0_75 = arith.constant 0 : index
    %c235_76 = arith.constant 235 : index
    %100 = vector.load %arg5[%c0_74, %c0_75, %c235_76] : memref<1x8x324xf32, #tpu.memory_space<vmem>>, vector<1x8x16xf32>
    %101 = vector.shape_cast %100 : vector<1x8x16xf32> to vector<8x16xf32>
    %102 = vector.shape_cast %99 : vector<8x16xf32> to vector<1x8x16xf32>
    tpu.vector_store %arg5[%c0_74, %c0_75, %c235_76], %102 {strides = array<i32>} : memref<1x8x324xf32, #tpu.memory_space<vmem>>, vector<1x8x16xf32>,
    %c0_77 = arith.constant 0 : index
    %c0_78 = arith.constant 0 : index
    %c253 = arith.constant 253 : index
    %103 = vector.load %arg5[%c0_77, %c0_78, %c253] : memref<1x8x324xf32, #tpu.memory_space<vmem>>, vector<1x8x16xf32>
    %104 = vector.shape_cast %103 : vector<1x8x16xf32> to vector<8x16xf32>
    %105 = vector.extract_strided_slice %3 {offsets = [0, 208], sizes = [8, 16], strides = [1, 1]} : vector<8x256xf32> to vector<8x16xf32>
    %106 = arith.addf %104, %105 : vector<8x16xf32>
    %c0_79 = arith.constant 0 : index
    %c0_80 = arith.constant 0 : index
    %c253_81 = arith.constant 253 : index
    %107 = vector.load %arg5[%c0_79, %c0_80, %c253_81] : memref<1x8x324xf32, #tpu.memory_space<vmem>>, vector<1x8x16xf32>
    %108 = vector.shape_cast %107 : vector<1x8x16xf32> to vector<8x16xf32>
    %109 = vector.shape_cast %106 : vector<8x16xf32> to vector<1x8x16xf32>
    tpu.vector_store %arg5[%c0_79, %c0_80, %c253_81], %109 {strides = array<i32>} : memref<1x8x324xf32, #tpu.memory_space<vmem>>, vector<1x8x16xf32>,
    %c0_82 = arith.constant 0 : index
    %c0_83 = arith.constant 0 : index
    %c271 = arith.constant 271 : index
    %110 = vector.load %arg5[%c0_82, %c0_83, %c271] : memref<1x8x324xf32, #tpu.memory_space<vmem>>, vector<1x8x16xf32>
    %111 = vector.shape_cast %110 : vector<1x8x16xf32> to vector<8x16xf32>
    %112 = vector.extract_strided_slice %3 {offsets = [0, 224], sizes = [8, 16], strides = [1, 1]} : vector<8x256xf32> to vector<8x16xf32>
    %113 = arith.addf %111, %112 : vector<8x16xf32>
    %c0_84 = arith.constant 0 : index
    %c0_85 = arith.constant 0 : index
    %c271_86 = arith.constant 271 : index
    %114 = vector.load %arg5[%c0_84, %c0_85, %c271_86] : memref<1x8x324xf32, #tpu.memory_space<vmem>>, vector<1x8x16xf32>
    %115 = vector.shape_cast %114 : vector<1x8x16xf32> to vector<8x16xf32>
    %116 = vector.shape_cast %113 : vector<8x16xf32> to vector<1x8x16xf32>
    tpu.vector_store %arg5[%c0_84, %c0_85, %c271_86], %116 {strides = array<i32>} : memref<1x8x324xf32, #tpu.memory_space<vmem>>, vector<1x8x16xf32>,
    %c0_87 = arith.constant 0 : index
    %c0_88 = arith.constant 0 : index
    %c289 = arith.constant 289 : index
    %117 = vector.load %arg5[%c0_87, %c0_88, %c289] : memref<1x8x324xf32, #tpu.memory_space<vmem>>, vector<1x8x16xf32>
    %118 = vector.shape_cast %117 : vector<1x8x16xf32> to vector<8x16xf32>
    %119 = vector.extract_strided_slice %3 {offsets = [0, 240], sizes = [8, 16], strides = [1, 1]} : vector<8x256xf32> to vector<8x16xf32>
    %120 = arith.addf %118, %119 : vector<8x16xf32>
    %c0_89 = arith.constant 0 : index
    %c0_90 = arith.constant 0 : index
    %c289_91 = arith.constant 289 : index
    %121 = vector.load %arg5[%c0_89, %c0_90, %c289_91] : memref<1x8x324xf32, #tpu.memory_space<vmem>>, vector<1x8x16xf32>
    %122 = vector.shape_cast %121 : vector<1x8x16xf32> to vector<8x16xf32>
    %123 = vector.shape_cast %120 : vector<8x16xf32> to vector<1x8x16xf32>
    tpu.vector_store %arg5[%c0_89, %c0_90, %c289_91], %123 {strides = array<i32>} : memref<1x8x324xf32, #tpu.memory_space<vmem>>, vector<1x8x16xf32>,
    return
  }
  func.func @transform_0(%arg0: i32) -> (i32, i32, i32) {
    %c0_i32 = arith.constant 0 : i32
    %c0_i32_0 = arith.constant 0 : i32
    %c0_i32_1 = arith.constant 0 : i32
    return %arg0, %c0_i32, %c0_i32_0 : i32, i32, i32
  }
  func.func @transform_1(%arg0: i32) -> (i32, i32) {
    %c0_i32 = arith.constant 0 : i32
    %c0_i32_0 = arith.constant 0 : i32
    %c0_i32_1 = arith.constant 0 : i32
    return %c0_i32, %c0_i32_0 : i32, i32
  }
  func.func @transform_2(%arg0: i32) -> (i32, i32) {
    %c0_i32 = arith.constant 0 : i32
    %c0_i32_0 = arith.constant 0 : i32
    %c0_i32_1 = arith.constant 0 : i32
    return %c0_i32, %c0_i32_0 : i32, i32
  }
  func.func @transform_3(%arg0: i32) -> (i32, i32, i32) {
    %c0_i32 = arith.constant 0 : i32
    %c0_i32_0 = arith.constant 0 : i32
    %c0_i32_1 = arith.constant 0 : i32
    return %arg0, %c0_i32, %c0_i32_0 : i32, i32, i32
  }
  func.func @transform_4(%arg0: i32) -> (i32, i32, i32) {
    %c0_i32 = arith.constant 0 : i32
    %c0_i32_0 = arith.constant 0 : i32
    %c0_i32_1 = arith.constant 0 : i32
    return %arg0, %c0_i32, %c0_i32_0 : i32, i32, i32
  }
}

</mosaic_0001>

<llo_original>
// kernel: model_forward.1
$region0: #{model_forward.1}
  #allocation0 [shape = 'u32[]', space=smem, size = 0x4, offset = 0x4, fixed_abs, tag = 'smem constant byte address 0x4 - core index']
  #allocation1 [shape = 'u32[144,128]{1,0:T(1,128)}', space=vmem, size = 0x12000, scoped, tag = 'internal scratch']
  %s0 = inlined_call_operand.vmem [shape: f32[2,12,256], index: 0, kind: input, shape index: {}]
  %s1 = inlined_call_operand.vmem [shape: f32[8,12], index: 1, kind: input, shape index: {}]
  %s2 = inlined_call_operand.vmem [shape: f32[8,1], index: 2, kind: input, shape index: {}]
  %s3 = inlined_call_operand.vmem [shape: f32[2,8,324], index: 3, kind: input, shape index: {}]
  %s4 = inlined_call_operand.vmem [shape: f32[2,8,324], index: 4, kind: output, shape index: {}]
  %s5 = sld [smem:[#allocation0]]
  $region49: #{model_forward.1} parent=0
    _
  %s7 = ssub.s32 1, %s5
  %s8 = scalar_select 0, %s7, %s5
  loop: start=0, step=1, limit=4
  $region2: #{model_forward.1} parent=0 // loop_pre_header
    _
  $region3: #{model_forward.1} parent=0 // loop_header
    %s10 = sphi 0, %s14
    %p11 = scmp.ge.s32.totalorder %s10, 4
    %s20 = sphi 0, %s22
    %s23 = sphi 0, %s20
    %s24 = sphi 0, %s23
    %s40 = sphi 0, %s24
    %s44 = sphi 0, %s44
    %s46 = sphi 0, %s44
    %s47 = sphi 0, %s46
    %s61 = sphi 0, %s47
    %s65 = sphi 0, %s65
    %s67 = sphi 0, %s65
    %s68 = sphi 0, %s67
    %s82 = sphi 0, %s68
    %s88 = sphi 0, %s90
    %s91 = sphi 0, %s88
    %s92 = sphi 0, %s91
    %s108 = sphi 0, %s92
    %s114 = sphi 0, %s116
    %s117 = sphi 0, %s114
    %s118 = sphi 0, %s117
    %s134 = sphi 0, %s118
  $region4: #{model_forward.1} parent=0 // loop_header_branch
    %13 = sbr.rel (%p11) target = $region8
  $region5: #{model_forward.1} parent=0 // loop_body
    %s15 = ssub.s32 %s10, 1
    %s16 = ssub.s32 %s10, 2
    %s17 = sadd.s32 %s10, 1
    %s18 = ssub.s32 %s10, %s17
    %p19 = scmp.eq.s32.totalorder %s18, 0
    %s21 = sadd.s32 %s20, 1
    %s22 = scalar_select %p19, %s20, %s21
    %p25 = pneg %p19
    %p26 = scmp.eq.s32.totalorder %s10, 1
    %p27 = por %p25, %p26
    %p28 = scmp.ne.s32.totalorder %s20, %s23
    %p29 = scmp.eq.s32.totalorder %s10, 0
    %p30 = por %p28, %p29
    %p31 = scmp.ne.s32.totalorder %s20, %s23
    %p32 = scmp.eq.s32.totalorder %s15, 1
    %p33 = por %p31, %p32
    %p34 = scmp.ne.s32.totalorder %s23, %s24
    %p35 = scmp.eq.s32.totalorder %s15, 0
    %p36 = por %p34, %p35
    %p37 = scmp.ne.s32.totalorder %s23, %s24
    %p38 = scmp.eq.s32.totalorder %s16, 1
    %p39 = por %p37, %p38
    %p41 = scmp.ne.s32.totalorder %s24, %s40
    %p42 = scmp.eq.s32.totalorder %s16, 0
    %p43 = por %p41, %p42
    %s45 = sadd.s32 %s44, 1
    %p48 = scmp.eq.s32.totalorder %s10, 1
    %p49 = scmp.ne.s32.totalorder %s44, %s46
    %p50 = scmp.eq.s32.totalorder %s10, 0
    %p51 = por %p49, %p50
    %p52 = scmp.ne.s32.totalorder %s44, %s46
    %p53 = scmp.eq.s32.totalorder %s15, 1
    %p54 = por %p52, %p53
    %p55 = scmp.ne.s32.totalorder %s46, %s47
    %p56 = scmp.eq.s32.totalorder %s15, 0
    %p57 = por %p55, %p56
    %p58 = scmp.ne.s32.totalorder %s46, %s47
    %p59 = scmp.eq.s32.totalorder %s16, 1
    %p60 = por %p58, %p59
    %p62 = scmp.ne.s32.totalorder %s47, %s61
    %p63 = scmp.eq.s32.totalorder %s16, 0
    %p64 = por %p62, %p63
    %s66 = sadd.s32 %s65, 1
    %p69 = scmp.eq.s32.totalorder %s10, 1
    %p70 = scmp.ne.s32.totalorder %s65, %s67
    %p71 = scmp.eq.s32.totalorder %s10, 0
    %p72 = por %p70, %p71
    %p73 = scmp.ne.s32.totalorder %s65, %s67
    %p74 = scmp.eq.s32.totalorder %s15, 1
    %p75 = por %p73, %p74
    %p76 = scmp.ne.s32.totalorder %s67, %s68
    %p77 = scmp.eq.s32.totalorder %s15, 0
    %p78 = por %p76, %p77
    %p79 = scmp.ne.s32.totalorder %s67, %s68
    %p80 = scmp.eq.s32.totalorder %s16, 1
    %p81 = por %p79, %p80
    %p83 = scmp.ne.s32.totalorder %s68, %s82
    %p84 = scmp.eq.s32.totalorder %s16, 0
    %p85 = por %p83, %p84
    %s86 = ssub.s32 %s10, %s17
    %p87 = scmp.eq.s32.totalorder %s86, 0
    %s89 = sadd.s32 %s88, 1
    %s90 = scalar_select %p87, %s88, %s89
    %p93 = pneg %p87
    %p94 = scmp.eq.s32.totalorder %s10, 1
    %p95 = por %p93, %p94
    %p96 = scmp.ne.s32.totalorder %s88, %s91
    %p97 = scmp.eq.s32.totalorder %s10, 0
    %p98 = por %p96, %p97
    %p99 = scmp.ne.s32.totalorder %s88, %s91
    %p100 = scmp.eq.s32.totalorder %s15, 1
    %p101 = por %p99, %p100
    %p102 = scmp.ne.s32.totalorder %s91, %s92
    %p103 = scmp.eq.s32.totalorder %s15, 0
    %p104 = por %p102, %p103
    %p105 = scmp.ne.s32.totalorder %s91, %s92
    %p106 = scmp.eq.s32.totalorder %s16, 1
    %p107 = por %p105, %p106
    %p109 = scmp.ne.s32.totalorder %s92, %s108
    %p110 = scmp.eq.s32.totalorder %s16, 0
    %p111 = por %p109, %p110
    %s112 = ssub.s32 %s10, %s17
    %p113 = scmp.eq.s32.totalorder %s112, 0
    %s115 = sadd.s32 %s114, 1
    %s116 = scalar_select %p113, %s114, %s115
    %p119 = pneg %p113
    %p120 = scmp.eq.s32.totalorder %s10, 1
    %p121 = por %p119, %p120
    %p122 = scmp.ne.s32.totalorder %s114, %s117
    %p123 = scmp.eq.s32.totalorder %s10, 0
    %p124 = por %p122, %p123
    %p125 = scmp.ne.s32.totalorder %s114, %s117
    %p126 = scmp.eq.s32.totalorder %s15, 1
    %p127 = por %p125, %p126
    %p128 = scmp.ne.s32.totalorder %s117, %s118
    %p129 = scmp.eq.s32.totalorder %s15, 0
    %p130 = por %p128, %p129
    %p131 = scmp.ne.s32.totalorder %s117, %s118
    %p132 = scmp.eq.s32.totalorder %s16, 1
    %p133 = por %p131, %p132
    %p135 = scmp.ne.s32.totalorder %s118, %s134
    %p136 = scmp.eq.s32.totalorder %s16, 0
    %p137 = por %p135, %p136
    %p138 = scmp.le.s32.totalorder 1, %s10
    %p139 = scmp.lt.s32.totalorder %s10, 3
    %p140 = pnand %p138, %p139
    %p141 = pneg %p140
    // Predicated region
    $region9: #{model_forward.1} parent=5 // pred_check
      _
    $region10: #{model_forward.1} parent=5 // pred_check_branch
      %143 = sbr.rel (%p140) target = $region12
    $region11: #{model_forward.1} parent=5 // pred_region
      %s144 = ssub.s32 %s10, 1
      // Predicated region
      $region13: #{model_forward.1} parent=11 // pred_check
        %p145 = pneg %p57
      $region14: #{model_forward.1} parent=11 // pred_check_branch
        %147 = sbr.rel (%p145) target = $region16
      $region15: #{model_forward.1} parent=11 // pred_region
        _
      $region16: #{model_forward.1} parent=11 // pred_fallthru
        _
      // Predicated region
      $region17: #{model_forward.1} parent=11 // pred_check
        %p148 = pneg %p78
      $region18: #{model_forward.1} parent=11 // pred_check_branch
        %150 = sbr.rel (%p148) target = $region20
      $region19: #{model_forward.1} parent=11 // pred_region
        _
      $region20: #{model_forward.1} parent=11 // pred_fallthru
        _
    $region12: #{model_forward.1} parent=5 // pred_fallthru
      _
    %p151 = scmp.lt.s32.totalorder %s10, 2
    // Predicated region
    $region21: #{model_forward.1} parent=5 // pred_check
      %p152 = pneg %p151
    $region22: #{model_forward.1} parent=5 // pred_check_branch
      %154 = sbr.rel (%p152) target = $region24
    $region23: #{model_forward.1} parent=5 // pred_region
      // Predicated region
      $region25: #{model_forward.1} parent=23 // pred_check
        %p155 = pneg %p30
      $region26: #{model_forward.1} parent=23 // pred_check_branch
        %157 = sbr.rel (%p155) target = $region28
      $region27: #{model_forward.1} parent=23 // pred_region
        %p158 = scmp.lt.s32.totalorder %s10, 1
        %s159 = scalar_select %p158, %s10, 1
        %s160 = smul.addr %s159, 4
        %s161 = smul.addr %s160, 8
        %s162 = scalar_lea.vmem %s0, %s161
      $region28: #{model_forward.1} parent=23 // pred_fallthru
        _
      // Predicated region
      $region29: #{model_forward.1} parent=23 // pred_check
        %p163 = pneg %p98
      $region30: #{model_forward.1} parent=23 // pred_check_branch
        %165 = sbr.rel (%p163) target = $region32
      $region31: #{model_forward.1} parent=23 // pred_region
        %p166 = scmp.lt.s32.totalorder %s10, 1
        %s167 = scalar_select %p166, %s10, 1
        %s168 = smul.addr %s167, 3
        %s169 = smul.addr %s168, 8
        %s170 = scalar_lea.vmem %s3, %s169
      $region32: #{model_forward.1} parent=23 // pred_fallthru
        _
    $region24: #{model_forward.1} parent=5 // pred_fallthru
      _
    %p171 = scmp.le.s32.totalorder 1, %s10
    %p172 = scmp.lt.s32.totalorder %s10, 3
    %p173 = pnand %p171, %p172
    %p174 = pneg %p173
    // Predicated region
    $region33: #{model_forward.1} parent=5 // pred_check
      _
    $region34: #{model_forward.1} parent=5 // pred_check_branch
      %176 = sbr.rel (%p173) target = $region36
    $region35: #{model_forward.1} parent=5 // pred_region
      %s177 = ssub.s32 %s10, 1
      %p178 = scmp.lt.s32.totalorder %s15, 1
      %s179 = scalar_select %p178, %s15, 1
      %s180 = smul.addr %s179, 4
      %s181 = smul.addr %s180, 8
      %s182 = scalar_lea.vmem %s0, %s181
      %p183 = pneg %p36
      %p184 = pneg %p33
      %p185 = pneg %p57
      %p186 = pneg %p54
      %p187 = pneg %p78
      %p188 = pneg %p75
      %p189 = scmp.lt.s32.totalorder %s15, 1
      %s190 = scalar_select %p189, %s15, 1
      %s191 = smul.addr %s190, 3
      %s192 = smul.addr %s191, 8
      %s193 = scalar_lea.vmem %s3, %s192
      %p194 = pneg %p104
      %p195 = pneg %p101
      %p196 = pneg %p130
      %p197 = pneg %p127
      %p198 = scmp.lt.s32.totalorder %s15, 1
      %s199 = scalar_select %p198, %s15, 1
      %s200 = smul.addr %s199, 3
      %s201 = smul.addr %s200, 8
      %s202 = scalar_lea.vmem %s4, %s201
      %p203 = scmp.lt.s32.totalorder %s15, 1
      %s204 = scalar_select %p203, %s15, 1
      %s205 = smul.addr %s204, 4
      %s206 = smul.addr %s205, 8
      %s207 = scalar_lea.vmem %s0, %s206
      %p208 = scmp.lt.s32.totalorder %s15, 1
      %s209 = scalar_select %p208, %s15, 1
      %s210 = smul.addr %s209, 3
      %s211 = smul.addr %s210, 8
      %s212 = scalar_lea.vmem %s3, %s211
      %p213 = scmp.lt.s32.totalorder %s15, 1
      %s214 = scalar_select %p213, %s15, 1
      %s215 = smul.addr %s214, 3
      %s216 = smul.addr %s215, 8
      %s217 = scalar_lea.vmem %s4, %s216
      %v218 = vld [vmem:[%s1] sm:$0xff]
      %v219 = vld [vmem:[%s207] sm:$0xff]
      %v220 = vld [vmem:[%s207 + $0x8] sm:$0xff]
      %v221 = vld [vmem:[%s207 + $0x10] sm:$0xf]
      %v222 = vld [vmem:[%s207 + $0x18] sm:$0xf]
      %vm223 = vcmask 97280
      %v225 = vsel %vm223, %v218, 0
      %vm227 = vcmask 1043456
      %v229 = vsel %vm227, %v221, 0
      %v232 = vsel %vm227, %v222, 0
      %v234 = vand.u32 %v220, 4294901760
      %235 = vmatprep.subr.mxu0 %v234
      %v236 = vand.u32 %v219, 4294901760
      %237 = vmatpush1.msra.mxu0 %v236
      %v238 = vand.u32 %v232, 4294901760
      %239 = vmatprep.subr.mxu0 %v238
      %v240 = vand.u32 %v229, 4294901760
      %241 = vmatpush1.msra.mxu0 %v240
      %242 = vmatprep.subr.mxu0 0.0
      %243 = vmatpush1.msra.mxu0 0.0
      %244 = vmatprep.subr.mxu0 0.0
      %245 = vmatpush1.msra.mxu0 0.0
      %246 = vmatprep.subr.mxu0 0.0
      %247 = vmatpush1.msra.mxu0 0.0
      %248 = vmatprep.subr.mxu0 0.0
      %249 = vmatpush1.msra.mxu0 0.0
      %250 = vmatprep.subr.mxu0 0.0
      %251 = vmatpush1.msra.mxu0 0.0
      %252 = vmatprep.subr.mxu0 0.0
      %253 = vmatpush1.msra.mxu0 0.0
      %254 = vmatprep.subr.mxu0 0.0
      %255 = vmatpush1.msra.mxu0 0.0
      %256 = vmatprep.subr.mxu0 0.0
      %257 = vmatpush1.msra.mxu0 0.0
      %258 = vmatprep.subr.mxu0 0.0
      %259 = vmatpush1.msra.mxu0 0.0
      %260 = vmatprep.subr.mxu0 0.0
      %261 = vmatpush1.msra.mxu0 0.0
      %262 = vmatprep.subr.mxu0 0.0
      %263 = vmatpush1.msra.mxu0 0.0
      %264 = vmatprep.subr.mxu0 0.0
      %265 = vmatpush1.msra.mxu0 0.0
      %266 = vmatprep.subr.mxu0 0.0
      %267 = vmatpush1.msra.mxu0 0.0
      %268 = vmatprep.subr.mxu0 0.0
      %269 = vmatpush1.msra.mxu0 0.0
      %270 = vmatprep.subr.mxu0 0.0
      %271 = vmatpush1.msra.mxu0 0.0
      %272 = vmatprep.subr.mxu0 0.0
      %273 = vmatpush1.msra.mxu0 0.0
      %274 = vmatprep.subr.mxu0 0.0
      %275 = vmatpush1.msra.mxu0 0.0
      %276 = vmatprep.subr.mxu0 0.0
      %277 = vmatpush1.msra.mxu0 0.0
      %278 = vmatprep.subr.mxu0 0.0
      %279 = vmatpush1.msra.mxu0 0.0
      %280 = vmatprep.subr.mxu0 0.0
      %281 = vmatpush1.msra.mxu0 0.0
      %282 = vmatprep.subr.mxu0 0.0
      %283 = vmatpush1.msra.mxu0 0.0
      %284 = vmatprep.subr.mxu0 0.0
      %285 = vmatpush1.msra.mxu0 0.0
      %286 = vmatprep.subr.mxu0 0.0
      %287 = vmatpush1.msra.mxu0 0.0
      %288 = vmatprep.subr.mxu0 0.0
      %289 = vmatpush1.msra.mxu0 0.0
      %290 = vmatprep.subr.mxu0 0.0
      %291 = vmatpush1.msra.mxu0 0.0
      %292 = vmatprep.subr.mxu0 0.0
      %293 = vmatpush1.msra.mxu0 0.0
      %294 = vmatprep.subr.mxu0 0.0
      %295 = vmatpush1.msra.mxu0 0.0
      %296 = vmatprep.subr.mxu0 0.0
      %297 = vmatpush1.msra.mxu0 0.0
      %298 = vmatprep.subr.mxu0 0.0
      %299 = vmatpush1.msra.mxu0 0.0
      %300 = vmatprep.subr.mxu0 0.0
      %301 = vmatpush1.msra.mxu0 0.0
      %302 = vmatprep.mubr.f32.mxu0 0.0
      %v303 = vand.u32 %v225, 4294901760
      %v304 = vsub.f32 %v225, %v303
      %v305 = vand.u32 %v304, 4294901760
      %v306 = vsub.f32 %v304, %v305
      %v307 = vand.u32 %v306, 4294901760
      %308 = vmatmul.mubr.f32.gmra.mrb[0].mxu0 %v307
      %v309 = vpop.f32.mrb[0].mxu0
      %v310 = vadd.f32 0.0, %v309
      %v311 = vpop.f32.mrb[0].mxu0
      %v312 = vadd.f32 0.0, %v311
      %313 = vdwg.mxu0
      %v314 = vand.u32 %v220, 4294901760
      %v315 = vsub.f32 %v220, %v314
      %v316 = vand.u32 %v315, 4294901760
      %v317 = vsub.f32 %v315, %v316
      %v318 = vand.u32 %v317, 4294901760
      %319 = vmatprep.subr.mxu0 %v318
      %v320 = vand.u32 %v219, 4294901760
      %v321 = vsub.f32 %v219, %v320
      %v322 = vand.u32 %v321, 4294901760
      %v323 = vsub.f32 %v321, %v322
      %v324 = vand.u32 %v323, 4294901760
      %325 = vmatpush1.msra.mxu0 %v324
      %v326 = vand.u32 %v232, 4294901760
      %v327 = vsub.f32 %v232, %v326
      %v328 = vand.u32 %v327, 4294901760
      %v329 = vsub.f32 %v327, %v328
      %v330 = vand.u32 %v329, 4294901760
      %331 = vmatprep.subr.mxu0 %v330
      %v332 = vand.u32 %v229, 4294901760
      %v333 = vsub.f32 %v229, %v332
      %v334 = vand.u32 %v333, 4294901760
      %v335 = vsub.f32 %v333, %v334
      %v336 = vand.u32 %v335, 4294901760
      %337 = vmatpush1.msra.mxu0 %v336
      %338 = vmatprep.subr.mxu0 0.0
      %339 = vmatpush1.msra.mxu0 0.0
      %340 = vmatprep.subr.mxu0 0.0
      %341 = vmatpush1.msra.mxu0 0.0
      %342 = vmatprep.subr.mxu0 0.0
      %343 = vmatpush1.msra.mxu0 0.0
      %344 = vmatprep.subr.mxu0 0.0
      %345 = vmatpush1.msra.mxu0 0.0
      %346 = vmatprep.subr.mxu0 0.0
      %347 = vmatpush1.msra.mxu0 0.0
      %348 = vmatprep.subr.mxu0 0.0
      %349 = vmatpush1.msra.mxu0 0.0
      %350 = vmatprep.subr.mxu0 0.0
      %351 = vmatpush1.msra.mxu0 0.0
      %352 = vmatprep.subr.mxu0 0.0
      %353 = vmatpush1.msra.mxu0 0.0
      %354 = vmatprep.subr.mxu0 0.0
      %355 = vmatpush1.msra.mxu0 0.0
      %356 = vmatprep.subr.mxu0 0.0
      %357 = vmatpush1.msra.mxu0 0.0
      %358 = vmatprep.subr.mxu0 0.0
      %359 = vmatpush1.msra.mxu0 0.0
      %360 = vmatprep.subr.mxu0 0.0
      %361 = vmatpush1.msra.mxu0 0.0
      %362 = vmatprep.subr.mxu0 0.0
      %363 = vmatpush1.msra.mxu0 0.0
      %364 = vmatprep.subr.mxu0 0.0
      %365 = vmatpush1.msra.mxu0 0.0
      %366 = vmatprep.subr.mxu0 0.0
      %367 = vmatpush1.msra.mxu0 0.0
      %368 = vmatprep.subr.mxu0 0.0
      %369 = vmatpush1.msra.mxu0 0.0
      %370 = vmatprep.subr.mxu0 0.0
      %371 = vmatpush1.msra.mxu0 0.0
      %372 = vmatprep.subr.mxu0 0.0
      %373 = vmatpush1.msra.mxu0 0.0
      %374 = vmatprep.subr.mxu0 0.0
      %375 = vmatpush1.msra.mxu0 0.0
      %376 = vmatprep.subr.mxu0 0.0
      %377 = vmatpush1.msra.mxu0 0.0
      %378 = vmatprep.subr.mxu0 0.0
      %379 = vmatpush1.msra.mxu0 0.0
      %380 = vmatprep.subr.mxu0 0.0
      %381 = vmatpush1.msra.mxu0 0.0
      %382 = vmatprep.subr.mxu0 0.0
      %383 = vmatpush1.msra.mxu0 0.0
      %384 = vmatprep.subr.mxu0 0.0
      %385 = vmatpush1.msra.mxu0 0.0
      %386 = vmatprep.subr.mxu0 0.0
      %387 = vmatpush1.msra.mxu0 0.0
      %388 = vmatprep.subr.mxu0 0.0
      %389 = vmatpush1.msra.mxu0 0.0
      %390 = vmatprep.subr.mxu0 0.0
      %391 = vmatpush1.msra.mxu0 0.0
      %392 = vmatprep.subr.mxu0 0.0
      %393 = vmatpush1.msra.mxu0 0.0
      %394 = vmatprep.subr.mxu0 0.0
      %395 = vmatpush1.msra.mxu0 0.0
      %396 = vmatprep.subr.mxu0 0.0
      %397 = vmatpush1.msra.mxu0 0.0
      %398 = vmatprep.mubr.f32.mxu0 0.0
      %v399 = vand.u32 %v225, 4294901760
      %400 = vmatmul.mubr.f32.gmra.mrb[0].mxu0 %v399
      %v401 = vpop.f32.mrb[0].mxu0
      %v402 = vadd.f32 %v310, %v401
      %v403 = vpop.f32.mrb[0].mxu0
      %v404 = vadd.f32 %v312, %v403
      %405 = vdwg.mxu0
      %v406 = vand.u32 %v220, 4294901760
      %v407 = vsub.f32 %v220, %v406
      %408 = vmatprep.subr.mxu0 %v407
      %v409 = vand.u32 %v219, 4294901760
      %v410 = vsub.f32 %v219, %v409
      %411 = vmatpush1.msra.mxu0 %v410
      %v412 = vand.u32 %v232, 4294901760
      %v413 = vsub.f32 %v232, %v412
      %414 = vmatprep.subr.mxu0 %v413
      %v415 = vand.u32 %v229, 4294901760
      %v416 = vsub.f32 %v229, %v415
      %417 = vmatpush1.msra.mxu0 %v416
      %418 = vmatprep.subr.mxu0 0.0
      %419 = vmatpush1.msra.mxu0 0.0
      %420 = vmatprep.subr.mxu0 0.0
      %421 = vmatpush1.msra.mxu0 0.0
      %422 = vmatprep.subr.mxu0 0.0
      %423 = vmatpush1.msra.mxu0 0.0
      %424 = vmatprep.subr.mxu0 0.0
      %425 = vmatpush1.msra.mxu0 0.0
      %426 = vmatprep.subr.mxu0 0.0
      %427 = vmatpush1.msra.mxu0 0.0
      %428 = vmatprep.subr.mxu0 0.0
      %429 = vmatpush1.msra.mxu0 0.0
      %430 = vmatprep.subr.mxu0 0.0
      %431 = vmatpush1.msra.mxu0 0.0
      %432 = vmatprep.subr.mxu0 0.0
      %433 = vmatpush1.msra.mxu0 0.0
      %434 = vmatprep.subr.mxu0 0.0
      %435 = vmatpush1.msra.mxu0 0.0
      %436 = vmatprep.subr.mxu0 0.0
      %437 = vmatpush1.msra.mxu0 0.0
      %438 = vmatprep.subr.mxu0 0.0
      %439 = vmatpush1.msra.mxu0 0.0
      %440 = vmatprep.subr.mxu0 0.0
      %441 = vmatpush1.msra.mxu0 0.0
      %442 = vmatprep.subr.mxu0 0.0
      %443 = vmatpush1.msra.mxu0 0.0
      %444 = vmatprep.subr.mxu0 0.0
      %445 = vmatpush1.msra.mxu0 0.0
      %446 = vmatprep.subr.mxu0 0.0
      %447 = vmatpush1.msra.mxu0 0.0
      %448 = vmatprep.subr.mxu0 0.0
      %449 = vmatpush1.msra.mxu0 0.0
      %450 = vmatprep.subr.mxu0 0.0
      %451 = vmatpush1.msra.mxu0 0.0
      %452 = vmatprep.subr.mxu0 0.0
      %453 = vmatpush1.msra.mxu0 0.0
      %454 = vmatprep.subr.mxu0 0.0
      %455 = vmatpush1.msra.mxu0 0.0
      %456 = vmatprep.subr.mxu0 0.0
      %457 = vmatpush1.msra.mxu0 0.0
      %458 = vmatprep.subr.mxu0 0.0
      %459 = vmatpush1.msra.mxu0 0.0
      %460 = vmatprep.subr.mxu0 0.0
      %461 = vmatpush1.msra.mxu0 0.0
      %462 = vmatprep.subr.mxu0 0.0
      %463 = vmatpush1.msra.mxu0 0.0
      %464 = vmatprep.subr.mxu0 0.0
      %465 = vmatpush1.msra.mxu0 0.0
      %466 = vmatprep.subr.mxu0 0.0
      %467 = vmatpush1.msra.mxu0 0.0
      %468 = vmatprep.subr.mxu0 0.0
      %469 = vmatpush1.msra.mxu0 0.0
      %470 = vmatprep.subr.mxu0 0.0
      %471 = vmatpush1.msra.mxu0 0.0
      %472 = vmatprep.subr.mxu0 0.0
      %473 = vmatpush1.msra.mxu0 0.0
      %474 = vmatprep.subr.mxu0 0.0
      %475 = vmatpush1.msra.mxu0 0.0
      %476 = vmatprep.subr.mxu0 0.0
      %477 = vmatpush1.msra.mxu0 0.0
      %478 = vmatprep.mubr.f32.mxu0 0.0
      %v479 = vand.u32 %v225, 4294901760
      %v480 = vsub.f32 %v225, %v479
      %481 = vmatmul.mubr.f32.gmra.mrb[0].mxu0 %v480
      %v482 = vpop.f32.mrb[0].mxu0
      %v483 = vadd.f32 %v402, %v482
      %v484 = vpop.f32.mrb[0].mxu0
      %v485 = vadd.f32 %v404, %v484
      %486 = vdwg.mxu0
      %v487 = vand.u32 %v220, 4294901760
      %488 = vmatprep.subr.mxu0 %v487
      %v489 = vand.u32 %v219, 4294901760
      %490 = vmatpush1.msra.mxu0 %v489
      %v491 = vand.u32 %v232, 4294901760
      %492 = vmatprep.subr.mxu0 %v491
      %v493 = vand.u32 %v229, 4294901760
      %494 = vmatpush1.msra.mxu0 %v493
      %495 = vmatprep.subr.mxu0 0.0
      %496 = vmatpush1.msra.mxu0 0.0
      %497 = vmatprep.subr.mxu0 0.0
      %498 = vmatpush1.msra.mxu0 0.0
      %499 = vmatprep.subr.mxu0 0.0
      %500 = vmatpush1.msra.mxu0 0.0
      %501 = vmatprep.subr.mxu0 0.0
      %502 = vmatpush1.msra.mxu0 0.0
      %503 = vmatprep.subr.mxu0 0.0
      %504 = vmatpush1.msra.mxu0 0.0
      %505 = vmatprep.subr.mxu0 0.0
      %506 = vmatpush1.msra.mxu0 0.0
      %507 = vmatprep.subr.mxu0 0.0
      %508 = vmatpush1.msra.mxu0 0.0
      %509 = vmatprep.subr.mxu0 0.0
      %510 = vmatpush1.msra.mxu0 0.0
      %511 = vmatprep.subr.mxu0 0.0
      %512 = vmatpush1.msra.mxu0 0.0
      %513 = vmatprep.subr.mxu0 0.0
      %514 = vmatpush1.msra.mxu0 0.0
      %515 = vmatprep.subr.mxu0 0.0
      %516 = vmatpush1.msra.mxu0 0.0
      %517 = vmatprep.subr.mxu0 0.0
      %518 = vmatpush1.msra.mxu0 0.0
      %519 = vmatprep.subr.mxu0 0.0
      %520 = vmatpush1.msra.mxu0 0.0
      %521 = vmatprep.subr.mxu0 0.0
      %522 = vmatpush1.msra.mxu0 0.0
      %523 = vmatprep.subr.mxu0 0.0
      %524 = vmatpush1.msra.mxu0 0.0
      %525 = vmatprep.subr.mxu0 0.0
      %526 = vmatpush1.msra.mxu0 0.0
      %527 = vmatprep.subr.mxu0 0.0
      %528 = vmatpush1.msra.mxu0 0.0
      %529 = vmatprep.subr.mxu0 0.0
      %530 = vmatpush1.msra.mxu0 0.0
      %531 = vmatprep.subr.mxu0 0.0
      %532 = vmatpush1.msra.mxu0 0.0
      %533 = vmatprep.subr.mxu0 0.0
      %534 = vmatpush1.msra.mxu0 0.0
      %535 = vmatprep.subr.mxu0 0.0
      %536 = vmatpush1.msra.mxu0 0.0
      %537 = vmatprep.subr.mxu0 0.0
      %538 = vmatpush1.msra.mxu0 0.0
      %539 = vmatprep.subr.mxu0 0.0
      %540 = vmatpush1.msra.mxu0 0.0
      %541 = vmatprep.subr.mxu0 0.0
      %542 = vmatpush1.msra.mxu0 0.0
      %543 = vmatprep.subr.mxu0 0.0
      %544 = vmatpush1.msra.mxu0 0.0
      %545 = vmatprep.subr.mxu0 0.0
      %546 = vmatpush1.msra.mxu0 0.0
      %547 = vmatprep.subr.mxu0 0.0
      %548 = vmatpush1.msra.mxu0 0.0
      %549 = vmatprep.subr.mxu0 0.0
      %550 = vmatpush1.msra.mxu0 0.0
      %551 = vmatprep.subr.mxu0 0.0
      %552 = vmatpush1.msra.mxu0 0.0
      %553 = vmatprep.subr.mxu0 0.0
      %554 = vmatpush1.msra.mxu0 0.0
      %555 = vmatprep.mubr.f32.mxu0 0.0
      %v556 = vand.u32 %v225, 4294901760
      %v557 = vsub.f32 %v225, %v556
      %v558 = vand.u32 %v557, 4294901760
      %559 = vmatmul.mubr.f32.gmra.mrb[0].mxu0 %v558
      %v560 = vpop.f32.mrb[0].mxu0
      %v561 = vadd.f32 %v483, %v560
      %v562 = vpop.f32.mrb[0].mxu0
      %v563 = vadd.f32 %v485, %v562
      %564 = vdwg.mxu0
      %v565 = vand.u32 %v220, 4294901760
      %v566 = vsub.f32 %v220, %v565
      %v567 = vand.u32 %v566, 4294901760
      %568 = vmatprep.subr.mxu0 %v567
      %v569 = vand.u32 %v219, 4294901760
      %v570 = vsub.f32 %v219, %v569
      %v571 = vand.u32 %v570, 4294901760
      %572 = vmatpush1.msra.mxu0 %v571
      %v573 = vand.u32 %v232, 4294901760
      %v574 = vsub.f32 %v232, %v573
      %v575 = vand.u32 %v574, 4294901760
      %576 = vmatprep.subr.mxu0 %v575
      %v577 = vand.u32 %v229, 4294901760
      %v578 = vsub.f32 %v229, %v577
      %v579 = vand.u32 %v578, 4294901760
      %580 = vmatpush1.msra.mxu0 %v579
      %581 = vmatprep.subr.mxu0 0.0
      %582 = vmatpush1.msra.mxu0 0.0
      %583 = vmatprep.subr.mxu0 0.0
      %584 = vmatpush1.msra.mxu0 0.0
      %585 = vmatprep.subr.mxu0 0.0
      %586 = vmatpush1.msra.mxu0 0.0
      %587 = vmatprep.subr.mxu0 0.0
      %588 = vmatpush1.msra.mxu0 0.0
      %589 = vmatprep.subr.mxu0 0.0
      %590 = vmatpush1.msra.mxu0 0.0
      %591 = vmatprep.subr.mxu0 0.0
      %592 = vmatpush1.msra.mxu0 0.0
      %593 = vmatprep.subr.mxu0 0.0
      %594 = vmatpush1.msra.mxu0 0.0
      %595 = vmatprep.subr.mxu0 0.0
      %596 = vmatpush1.msra.mxu0 0.0
      %597 = vmatprep.subr.mxu0 0.0
      %598 = vmatpush1.msra.mxu0 0.0
      %599 = vmatprep.subr.mxu0 0.0
      %600 = vmatpush1.msra.mxu0 0.0
      %601 = vmatprep.subr.mxu0 0.0
      %602 = vmatpush1.msra.mxu0 0.0
      %603 = vmatprep.subr.mxu0 0.0
      %604 = vmatpush1.msra.mxu0 0.0
      %605 = vmatprep.subr.mxu0 0.0
      %606 = vmatpush1.msra.mxu0 0.0
      %607 = vmatprep.subr.mxu0 0.0
      %608 = vmatpush1.msra.mxu0 0.0
      %609 = vmatprep.subr.mxu0 0.0
      %610 = vmatpush1.msra.mxu0 0.0
      %611 = vmatprep.subr.mxu0 0.0
      %612 = vmatpush1.msra.mxu0 0.0
      %613 = vmatprep.subr.mxu0 0.0
      %614 = vmatpush1.msra.mxu0 0.0
      %615 = vmatprep.subr.mxu0 0.0
      %616 = vmatpush1.msra.mxu0 0.0
      %617 = vmatprep.subr.mxu0 0.0
      %618 = vmatpush1.msra.mxu0 0.0
      %619 = vmatprep.subr.mxu0 0.0
      %620 = vmatpush1.msra.mxu0 0.0
      %621 = vmatprep.subr.mxu0 0.0
      %622 = vmatpush1.msra.mxu0 0.0
      %623 = vmatprep.subr.mxu0 0.0
      %624 = vmatpush1.msra.mxu0 0.0
      %625 = vmatprep.subr.mxu0 0.0
      %626 = vmatpush1.msra.mxu0 0.0
      %627 = vmatprep.subr.mxu0 0.0
      %628 = vmatpush1.msra.mxu0 0.0
      %629 = vmatprep.subr.mxu0 0.0
      %630 = vmatpush1.msra.mxu0 0.0
      %631 = vmatprep.subr.mxu0 0.0
      %632 = vmatpush1.msra.mxu0 0.0
      %633 = vmatprep.subr.mxu0 0.0
      %634 = vmatpush1.msra.mxu0 0.0
      %635 = vmatprep.subr.mxu0 0.0
      %636 = vmatpush1.msra.mxu0 0.0
      %637 = vmatprep.subr.mxu0 0.0
      %638 = vmatpush1.msra.mxu0 0.0
      %639 = vmatprep.subr.mxu0 0.0
      %640 = vmatpush1.msra.mxu0 0.0
      %641 = vmatprep.mubr.f32.mxu0 0.0
      %v642 = vand.u32 %v225, 4294901760
      %643 = vmatmul.mubr.f32.gmra.mrb[0].mxu0 %v642
      %v644 = vpop.f32.mrb[0].mxu0
      %v645 = vadd.f32 %v561, %v644
      %v646 = vpop.f32.mrb[0].mxu0
      %v647 = vadd.f32 %v563, %v646
      %648 = vdwg.mxu0
      %v649 = vand.u32 %v220, 4294901760
      %650 = vmatprep.subr.mxu0 %v649
      %v651 = vand.u32 %v219, 4294901760
      %652 = vmatpush1.msra.mxu0 %v651
      %v653 = vand.u32 %v232, 4294901760
      %654 = vmatprep.subr.mxu0 %v653
      %v655 = vand.u32 %v229, 4294901760
      %656 = vmatpush1.msra.mxu0 %v655
      %657 = vmatprep.subr.mxu0 0.0
      %658 = vmatpush1.msra.mxu0 0.0
      %659 = vmatprep.subr.mxu0 0.0
      %660 = vmatpush1.msra.mxu0 0.0
      %661 = vmatprep.subr.mxu0 0.0
      %662 = vmatpush1.msra.mxu0 0.0
      %663 = vmatprep.subr.mxu0 0.0
      %664 = vmatpush1.msra.mxu0 0.0
      %665 = vmatprep.subr.mxu0 0.0
      %666 = vmatpush1.msra.mxu0 0.0
      %667 = vmatprep.subr.mxu0 0.0
      %668 = vmatpush1.msra.mxu0 0.0
      %669 = vmatprep.subr.mxu0 0.0
      %670 = vmatpush1.msra.mxu0 0.0
      %671 = vmatprep.subr.mxu0 0.0
      %672 = vmatpush1.msra.mxu0 0.0
      %673 = vmatprep.subr.mxu0 0.0
      %674 = vmatpush1.msra.mxu0 0.0
      %675 = vmatprep.subr.mxu0 0.0
      %676 = vmatpush1.msra.mxu0 0.0
      %677 = vmatprep.subr.mxu0 0.0
      %678 = vmatpush1.msra.mxu0 0.0
      %679 = vmatprep.subr.mxu0 0.0
      %680 = vmatpush1.msra.mxu0 0.0
      %681 = vmatprep.subr.mxu0 0.0
      %682 = vmatpush1.msra.mxu0 0.0
      %683 = vmatprep.subr.mxu0 0.0
      %684 = vmatpush1.msra.mxu0 0.0
      %685 = vmatprep.subr.mxu0 0.0
      %686 = vmatpush1.msra.mxu0 0.0
      %687 = vmatprep.subr.mxu0 0.0
      %688 = vmatpush1.msra.mxu0 0.0
      %689 = vmatprep.subr.mxu0 0.0
      %690 = vmatpush1.msra.mxu0 0.0
      %691 = vmatprep.subr.mxu0 0.0
      %692 = vmatpush1.msra.mxu0 0.0
      %693 = vmatprep.subr.mxu0 0.0
      %694 = vmatpush1.msra.mxu0 0.0
      %695 = vmatprep.subr.mxu0 0.0
      %696 = vmatpush1.msra.mxu0 0.0
      %697 = vmatprep.subr.mxu0 0.0
      %698 = vmatpush1.msra.mxu0 0.0
      %699 = vmatprep.subr.mxu0 0.0
      %700 = vmatpush1.msra.mxu0 0.0
      %701 = vmatprep.subr.mxu0 0.0
      %702 = vmatpush1.msra.mxu0 0.0
      %703 = vmatprep.subr.mxu0 0.0
      %704 = vmatpush1.msra.mxu0 0.0
      %705 = vmatprep.subr.mxu0 0.0
      %706 = vmatpush1.msra.mxu0 0.0
      %707 = vmatprep.subr.mxu0 0.0
      %708 = vmatpush1.msra.mxu0 0.0
      %709 = vmatprep.subr.mxu0 0.0
      %710 = vmatpush1.msra.mxu0 0.0
      %711 = vmatprep.subr.mxu0 0.0
      %712 = vmatpush1.msra.mxu0 0.0
      %713 = vmatprep.subr.mxu0 0.0
      %714 = vmatpush1.msra.mxu0 0.0
      %715 = vmatprep.subr.mxu0 0.0
      %716 = vmatpush1.msra.mxu0 0.0
      %717 = vmatprep.mubr.f32.mxu0 0.0
      %v718 = vand.u32 %v225, 4294901760
      %719 = vmatmul.mubr.f32.gmra.mrb[0].mxu0 %v718
      %v720 = vpop.f32.mrb[0].mxu0
      %v721 = vadd.f32 %v645, %v720
      %v722 = vpop.f32.mrb[0].mxu0
      %v723 = vadd.f32 %v647, %v722
      %724 = vdwg.mxu0
      %v725 = vld [vmem:[%s212] sm:$0xff]
      %v726 = vld [vmem:[%s212 + $0x8] sm:$0xff]
      %v727 = vld [vmem:[%s212 + $0x10] sm:$0xff]
      %v728 = vld [vmem:[%s2] sm:$0xff]
      %730 = vset.pattern.permute.xlu0 0
      %731 = vperm.xlu0 %730, %v728
      %v732 = vpop.permute.xlu0 %731
      %v734 = vadd.f32 %v725, %v732
      %v735 = vadd.f32 %v726, %v732
      %v736 = vadd.f32 %v727, %v732
      %737 = vst [vmem:[%s217] sm:$0xff] %v734
      %738 = vst [vmem:[%s217 + $0x8] sm:$0xff] %v735
      %vm739 = vcmask 556032
      %740 = vst.msk [vmem:[%s217 + $0x10] sm:$0xff] %vm739, %v736
      %v741 = vld [vmem:[%s217] sm:$0xff]
      %743 = vrot.lane.b32.xlu0 %v721, 19
      %v744 = vpop.permute.xlu0 %743
      %v746 = vadd.f32 %v741, %v744
      %vm747 = vcmask 285848
      %748 = vst.msk [vmem:[%s217] sm:$0xff] %vm747, %v746
      %v749 = vld [vmem:[%s217] sm:$0xff]
      %750 = vrot.lane.b32.xlu0 %v721, 21
      %v751 = vpop.permute.xlu0 %750
      %v753 = vadd.f32 %v749, %v751
      %vm754 = vcmask 433448
      %755 = vst.msk [vmem:[%s217] sm:$0xff] %vm754, %v753
      %v756 = vld [vmem:[%s217] sm:$0xff]
      %757 = vrot.lane.b32.xlu0 %v721, 23
      %v758 = vpop.permute.xlu0 %757
      %v760 = vadd.f32 %v756, %v758
      %vm761 = vcmask 581048
      %762 = vst.msk [vmem:[%s217] sm:$0xff] %vm761, %v760
      %v763 = vld [vmem:[%s217] sm:$0xff]
      %764 = vrot.lane.b32.xlu0 %v721, 25
      %v765 = vpop.permute.xlu0 %764
      %v767 = vadd.f32 %v763, %v765
      %vm768 = vcmask 728648
      %769 = vst.msk [vmem:[%s217] sm:$0xff] %vm768, %v767
      %v770 = vld [vmem:[%s217] sm:$0xff]
      %771 = vrot.lane.b32.xlu0 %v721, 27
      %v772 = vpop.permute.xlu0 %771
      %v774 = vadd.f32 %v770, %v772
      %vm775 = vcmask 876248
      %776 = vst.msk [vmem:[%s217] sm:$0xff] %vm775, %v774
      %v777 = vld [vmem:[%s217] sm:$0xff]
      %778 = vrot.lane.b32.xlu0 %v721, 29
      %v779 = vpop.permute.xlu0 %778
      %v781 = vadd.f32 %v777, %v779
      %vm782 = vcmask 1023848
      %783 = vst.msk [vmem:[%s217] sm:$0xff] %vm782, %v781
      %v784 = vld [vmem:[%s217] sm:$0xff]
      %v785 = vld [vmem:[%s217 + $0x8] sm:$0xff]
      %786 = vrot.lane.b32.xlu0 %v721, 31
      %v787 = vpop.permute.xlu0 %786
      %v789 = vadd.f32 %v784, %v787
      %v790 = vadd.f32 %v785, %v787
      %vm791 = vcmask 1048568
      %792 = vst.msk [vmem:[%s217] sm:$0xff] %vm791, %v789
      %vm793 = vcmask 121856
      %794 = vst.msk [vmem:[%s217 + $0x8] sm:$0xff] %vm793, %v790
      %v795 = vld [vmem:[%s217 + $0x8] sm:$0xff]
      %796 = vrot.lane.b32.xlu0 %v721, 33
      %v797 = vpop.permute.xlu0 %796
      %v799 = vadd.f32 %v795, %v797
      %vm800 = vcmask 269448
      %801 = vst.msk [vmem:[%s217 + $0x8] sm:$0xff] %vm800, %v799
      %v802 = vld [vmem:[%s217 + $0x8] sm:$0xff]
      %804 = vrot.lane.b32.xlu0 %v723, 35
      %v805 = vpop.permute.xlu0 %804
      %v807 = vadd.f32 %v802, %v805
      %vm808 = vcmask 417048
      %809 = vst.msk [vmem:[%s217 + $0x8] sm:$0xff] %vm808, %v807
      %v810 = vld [vmem:[%s217 + $0x8] sm:$0xff]
      %811 = vrot.lane.b32.xlu0 %v723, 37
      %v812 = vpop.permute.xlu0 %811
      %v814 = vadd.f32 %v810, %v812
      %vm815 = vcmask 564648
      %816 = vst.msk [vmem:[%s217 + $0x8] sm:$0xff] %vm815, %v814
      %v817 = vld [vmem:[%s217 + $0x8] sm:$0xff]
      %818 = vrot.lane.b32.xlu0 %v723, 39
      %v819 = vpop.permute.xlu0 %818
      %v821 = vadd.f32 %v817, %v819
      %vm822 = vcmask 712248
      %823 = vst.msk [vmem:[%s217 + $0x8] sm:$0xff] %vm822, %v821
      %v824 = vld [vmem:[%s217 + $0x8] sm:$0xff]
      %825 = vrot.lane.b32.xlu0 %v723, 41
      %v826 = vpop.permute.xlu0 %825
      %v828 = vadd.f32 %v824, %v826
      %vm829 = vcmask 859848
      %830 = vst.msk [vmem:[%s217 + $0x8] sm:$0xff] %vm829, %v828
      %v831 = vld [vmem:[%s217 + $0x8] sm:$0xff]
      %832 = vrot.lane.b32.xlu0 %v723, 43
      %v833 = vpop.permute.xlu0 %832
      %v835 = vadd.f32 %v831, %v833
      %vm836 = vcmask 1007448
      %837 = vst.msk [vmem:[%s217 + $0x8] sm:$0xff] %vm836, %v835
      %v838 = vld [vmem:[%s217 + $0x8] sm:$0xff]
      %v839 = vld [vmem:[%s217 + $0x10] sm:$0xff]
      %840 = vrot.lane.b32.xlu0 %v723, 45
      %v841 = vpop.permute.xlu0 %840
      %v843 = vadd.f32 %v838, %v841
      %v844 = vadd.f32 %v839, %v841
      %vm845 = vcmask 1048552
      %846 = vst.msk [vmem:[%s217 + $0x8] sm:$0xff] %vm845, %v843
      %vm847 = vcmask 105472
      %848 = vst.msk [vmem:[%s217 + $0x10] sm:$0xff] %vm847, %v844
      %v849 = vld [vmem:[%s217 + $0x10] sm:$0xff]
      %850 = vrot.lane.b32.xlu0 %v723, 47
      %v851 = vpop.permute.xlu0 %850
      %v853 = vadd.f32 %v849, %v851
      %vm854 = vcmask 253048
      %855 = vst.msk [vmem:[%s217 + $0x10] sm:$0xff] %vm854, %v853
      %v856 = vld [vmem:[%s217 + $0x10] sm:$0xff]
      %857 = vrot.lane.b32.xlu0 %v723, 49
      %v858 = vpop.permute.xlu0 %857
      %v860 = vadd.f32 %v856, %v858
      %vm861 = vcmask 400648
      %862 = vst.msk [vmem:[%s217 + $0x10] sm:$0xff] %vm861, %v860
      %p863 = scmp.lt.s32.totalorder %s15, 1
      %s864 = scalar_select %p863, %s15, 1
      %s865 = smul.addr %s864, 3
      %s866 = smul.addr %s865, 8
      %s867 = scalar_lea.vmem %s4, %s866
      // Predicated region
      $region37: #{model_forward.1} parent=35 // pred_check
        %p868 = pneg %p127
      $region38: #{model_forward.1} parent=35 // pred_check_branch
        %870 = sbr.rel (%p868) target = $region40
      $region39: #{model_forward.1} parent=35 // pred_region
        _
      $region40: #{model_forward.1} parent=35 // pred_fallthru
        _
    $region36: #{model_forward.1} parent=5 // pred_fallthru
      _
    %p871 = scmp.le.s32.totalorder 2, %s10
    // Predicated region
    $region41: #{model_forward.1} parent=5 // pred_check
      %p872 = pneg %p871
    $region42: #{model_forward.1} parent=5 // pred_check_branch
      %874 = sbr.rel (%p872) target = $region44
    $region43: #{model_forward.1} parent=5 // pred_region
      %s875 = ssub.s32 %s10, 2
      // Predicated region
      $region45: #{model_forward.1} parent=43 // pred_check
        %p876 = pneg %p133
      $region46: #{model_forward.1} parent=43 // pred_check_branch
        %878 = sbr.rel (%p876) target = $region48
      $region47: #{model_forward.1} parent=43 // pred_region
        %p879 = scmp.lt.s32.totalorder %s16, 1
        %s880 = scalar_select %p879, %s16, 1
        %s881 = smul.addr %s880, 3
        %s882 = smul.addr %s881, 8
        %s883 = scalar_lea.vmem %s4, %s882
      $region48: #{model_forward.1} parent=43 // pred_fallthru
        _
    $region44: #{model_forward.1} parent=5 // pred_fallthru
      _
  $region6: #{model_forward.1} parent=0 // loop_footer
    %s14 = sadd.s32 1, %s10
  $region7: #{model_forward.1} parent=0 // loop_footer_branch
    %9 = sbr.rel target = $region3
  $region8: #{model_forward.1} parent=0 // loop_exit
    _

</llo_original>
